<compile_context>
chip_gen: v7x
topology: tpu7x:2x2x1
jax: 0.10.0
libtpu: 0.0.40
codegen_flags: <defaults>
</compile_context>

<pallas_src>
import jax
import jax.numpy as jnp
from jax.experimental import pallas as pl
from jax.experimental.pallas import tpu as pltpu


def _softmax(x, axis):
    m = jnp.max(x, axis=axis, keepdims=True)
    e = jnp.exp(x - m)
    den = jnp.sum(e, axis=axis, keepdims=True)
    # EUP reciprocal instead of a VALU divide; approx=False keeps 1e-5 accuracy.
    return e * pl.reciprocal(den, approx=False)


def _attn_kernel(q_ref, k_ref, v_ref, w_ref, out_ref):
    # q (S,D), k (Sk,D), v (Sk,Dv), w (H,D,D) with scale_factor pre-folded,
    # out (S, H*Dv).  H is small and static -> Python-unrolled per head so
    # every value stays a 2-D tile (no (8,128)-crossing reshapes).
    H = w_ref.shape[0]
    Dv = v_ref.shape[1]

    q = q_ref[...]                      # (S, D)
    k = k_ref[...]                      # (Sk, D)
    v = v_ref[...]                      # (Sk, Dv)

    # Per-head MXU matmuls: wq_h = q @ w[h] -> (S,D); qk_h = wq_h @ k^T -> (S,Sk).
    qk = []
    for h in range(H):
        wq_h = jnp.dot(q, w_ref[h], preferred_element_type=jnp.float32)
        qk.append(jax.lax.dot_general(wq_h, k, (((1,), (1,)), ((), ())),
                                      preferred_element_type=jnp.float32))

    # Softmax over heads (torch dim=1): elementwise across the H head tiles.
    m = qk[0]
    for h in range(1, H):
        m = jnp.maximum(m, qk[h])
    e = [jnp.exp(t - m) for t in qk]
    den = e[0]
    for h in range(1, H):
        den = den + e[h]
    inv = pl.reciprocal(den, approx=False)

    outs = []
    for h in range(H):
        p_h = e[h] * inv                                     # softmax_qk, (S,Sk)
        # dropout -> identity (inference)
        dv_h = jnp.dot(p_h, v, preferred_element_type=jnp.float32)  # (S, Dv)
        sm_d = _softmax(dv_h, axis=1)    # torch dim=3: lane reduction over Dv
        # dropout -> identity (inference)
        sm_v = _softmax(sm_d, axis=0)    # torch dim=2: sublane reduction over S
        outs.append(sm_v * dv_h)         # (S, Dv)

    # Single lane-dense store of the (S, H*Dv) slab.
    out_ref[...] = jnp.concatenate(outs, axis=1)


def fold_weight(weight, scale_factor):
    """One-time parameter prep: squeeze batch and fold scale_factor into the
    weight (qk is linear in the weight, so (q@(s*w))@k^T == s*(q@w@k^T))."""
    return weight[0].astype(jnp.float32) * jnp.float32(scale_factor)


@jax.jit
def model_forward(query, key, value, w_scaled):
    """query (1,S,D), key (1,Sk,D), value (1,Sk,Dv), w_scaled (H,D,D) -> (1,H,S,Dv)."""
    q = query[0].astype(jnp.float32)     # (S, D)
    k = key[0].astype(jnp.float32)       # (Sk, D)
    v = value[0].astype(jnp.float32)     # (Sk, Dv)

    H, D, _ = w_scaled.shape
    S = q.shape[0]
    Dv = v.shape[1]

    out2d = pl.pallas_call(
        _attn_kernel,
        out_shape=jax.ShapeDtypeStruct((S, H * Dv), jnp.float32),
        in_specs=[
            pl.BlockSpec(memory_space=pltpu.MemorySpace.VMEM),   # query
            pl.BlockSpec(memory_space=pltpu.MemorySpace.VMEM),   # key
            pl.BlockSpec(memory_space=pltpu.MemorySpace.VMEM),   # value
            pl.BlockSpec(memory_space=pltpu.MemorySpace.VMEM),   # scale-folded weight
        ],
        out_specs=pl.BlockSpec(memory_space=pltpu.MemorySpace.VMEM),
    )(q, k, v, w_scaled)

    # (S, H*Dv) -> (1, H, S, Dv); fused into the jitted wrapper by XLA.
    out = out2d.reshape(S, H, Dv).transpose(1, 0, 2)
    return out[None]


def _reference(query, key, value, weight, scale_factor):
    # Pure-JAX mirror of the PyTorch forward (dropout = identity).
    wq = jnp.einsum('bsd,bhde->bhse', query, weight)
    qk = jnp.einsum('bhse,bke->bhsk', wq, key)
    scaled_qk = qk * scale_factor
    softmax_qk = jax.nn.softmax(scaled_qk, axis=1)
    dv = jnp.einsum('bhsk,bkv->bhsv', softmax_qk, value)
    softmax_dv = jax.nn.softmax(dv, axis=3)
    softmax_dropout_dv = jax.nn.softmax(softmax_dv, axis=2)
    return softmax_dropout_dv * dv


if __name__ == "__main__":
    # Small, self-consistent shapes implied by the forward pass:
    #   value_size (= D) = 32, n_heads H = 2, query seq S = 8,
    #   key/value seq Sk = 8, value feature Dv = 16, batch = 1.
    H, D, Dv, S, Sk = 2, 32, 16, 8, 8

    root = jax.random.PRNGKey(0)
    kq, kk, kv, kw = jax.random.split(root, 4)
    query = jax.random.normal(kq, (1, S, D), dtype=jnp.float32)
    key_ = jax.random.normal(kk, (1, Sk, D), dtype=jnp.float32)
    value = jax.random.normal(kv, (1, Sk, Dv), dtype=jnp.float32)
    # Deterministic init for Parameter(torch.Tensor(1, n_heads, D, D)).
    weight = jax.random.normal(kw, (1, H, D, D), dtype=jnp.float32)
    scale_factor = 0.5   # non-trivial scale to exercise the weight fold

    # One-time parameter prep (init-time), then the jitted forward.
    w_scaled = fold_weight(weight, scale_factor)
    out = model_forward(query, key_, value, w_scaled)
    out = jax.block_until_ready(out)

    ref = _reference(query, key_, value, weight, scale_factor)
    assert out.shape == (1, H, S, Dv), out.shape
    assert jnp.allclose(out, ref, atol=2e-5, rtol=2e-5), "mismatch vs reference"

    print("KERNEL_OK")
</pallas_src>

<mosaic_0001>
module attributes {stable_mosaic.version = 11 : i64} {
  func.func @_attn_kernel(%arg0: memref<8x32xf32, #tpu.memory_space<vmem>>, %arg1: memref<8x32xf32, #tpu.memory_space<vmem>>, %arg2: memref<8x16xf32, #tpu.memory_space<vmem>>, %arg3: memref<2x32x32xf32, #tpu.memory_space<vmem>>, %arg4: memref<8x32xf32, #tpu.memory_space<vmem>>) attributes {dimension_semantics = [], scalar_prefetch = 0 : i64, scratch_operands = 0 : i64, tpu.core_type = #tpu.core_type<tc>} {
    %c0 = arith.constant 0 : index
    %c0_0 = arith.constant 0 : index
    %0 = vector.load %arg0[%c0, %c0_0] : memref<8x32xf32, #tpu.memory_space<vmem>>, vector<8x32xf32>
    %c0_1 = arith.constant 0 : index
    %c0_2 = arith.constant 0 : index
    %1 = vector.load %arg1[%c0_1, %c0_2] : memref<8x32xf32, #tpu.memory_space<vmem>>, vector<8x32xf32>
    %c0_3 = arith.constant 0 : index
    %c0_4 = arith.constant 0 : index
    %2 = vector.load %arg2[%c0_3, %c0_4] : memref<8x16xf32, #tpu.memory_space<vmem>>, vector<8x16xf32>
    %c0_5 = arith.constant 0 : index
    %c0_6 = arith.constant 0 : index
    %c0_7 = arith.constant 0 : index
    %3 = vector.load %arg3[%c0_5, %c0_6, %c0_7] : memref<2x32x32xf32, #tpu.memory_space<vmem>>, vector<1x32x32xf32>
    %4 = vector.shape_cast %3 : vector<1x32x32xf32> to vector<32x32xf32>
    %cst = arith.constant dense<0.000000e+00> : vector<8x32xf32>
    %5 = tpu.matmul %0, %4, %cst {dimension_numbers = #tpu.dot_dimension_numbers<[1], [0], [0], [1], [0, 0, 1, 1], [], []>} : vector<8x32xf32>, vector<32x32xf32>, vector<8x32xf32> -> vector<8x32xf32>
    %cst_8 = arith.constant dense<0.000000e+00> : vector<8x8xf32>
    %6 = tpu.matmul %5, %1, %cst_8 {dimension_numbers = #tpu.dot_dimension_numbers<[1], [1], [0], [0], [0, 0, 1, 0], [], []>} : vector<8x32xf32>, vector<8x32xf32>, vector<8x8xf32> -> vector<8x8xf32>
    %c1 = arith.constant 1 : index
    %c0_9 = arith.constant 0 : index
    %c0_10 = arith.constant 0 : index
    %7 = vector.load %arg3[%c1, %c0_9, %c0_10] : memref<2x32x32xf32, #tpu.memory_space<vmem>>, vector<1x32x32xf32>
    %8 = vector.shape_cast %7 : vector<1x32x32xf32> to vector<32x32xf32>
    %cst_11 = arith.constant dense<0.000000e+00> : vector<8x32xf32>
    %9 = tpu.matmul %0, %8, %cst_11 {dimension_numbers = #tpu.dot_dimension_numbers<[1], [0], [0], [1], [0, 0, 1, 1], [], []>} : vector<8x32xf32>, vector<32x32xf32>, vector<8x32xf32> -> vector<8x32xf32>
    %cst_12 = arith.constant dense<0.000000e+00> : vector<8x8xf32>
    %10 = tpu.matmul %9, %1, %cst_12 {dimension_numbers = #tpu.dot_dimension_numbers<[1], [1], [0], [0], [0, 0, 1, 0], [], []>} : vector<8x32xf32>, vector<8x32xf32>, vector<8x8xf32> -> vector<8x8xf32>
    %11 = arith.maximumf %6, %10 : vector<8x8xf32>
    %12 = arith.subf %6, %11 : vector<8x8xf32>
    %13 = math.exp %12 : vector<8x8xf32>
    %14 = arith.subf %10, %11 : vector<8x8xf32>
    %15 = math.exp %14 : vector<8x8xf32>
    %16 = arith.addf %13, %15 : vector<8x8xf32>
    %17 = tpu.reciprocal %16 : vector<8x8xf32> -> vector<8x8xf32>
    %18 = arith.mulf %13, %17 : vector<8x8xf32>
    %cst_13 = arith.constant dense<0.000000e+00> : vector<8x16xf32>
    %19 = tpu.matmul %18, %2, %cst_13 {dimension_numbers = #tpu.dot_dimension_numbers<[1], [0], [0], [1], [0, 0, 1, 1], [], []>} : vector<8x8xf32>, vector<8x16xf32>, vector<8x16xf32> -> vector<8x16xf32>
    %cst_14 = arith.constant dense<0xFF800000> : vector<8xf32>
    %20 = vector.multi_reduction <maximumf>, %19, %cst_14 [1] : vector<8x16xf32> to vector<8xf32>
    %21 = vector.shape_cast %20 : vector<8xf32> to vector<8x1xf32>
    %22 = vector.broadcast %21 : vector<8x1xf32> to vector<8x16xf32>
    %23 = arith.subf %19, %22 : vector<8x16xf32>
    %24 = math.exp %23 : vector<8x16xf32>
    %cst_15 = arith.constant dense<0.000000e+00> : vector<8xf32>
    %25 = vector.multi_reduction <add>, %24, %cst_15 [1] : vector<8x16xf32> to vector<8xf32>
    %26 = vector.shape_cast %25 : vector<8xf32> to vector<8x1xf32>
    %27 = tpu.reciprocal %26 : vector<8x1xf32> -> vector<8x1xf32>
    %28 = vector.broadcast %27 : vector<8x1xf32> to vector<8x16xf32>
    %29 = arith.mulf %24, %28 : vector<8x16xf32>
    %cst_16 = arith.constant dense<0xFF800000> : vector<16xf32>
    %30 = vector.multi_reduction <maximumf>, %29, %cst_16 [0] : vector<8x16xf32> to vector<16xf32>
    %31 = vector.shape_cast %30 : vector<16xf32> to vector<1x16xf32>
    %32 = vector.broadcast %31 : vector<1x16xf32> to vector<8x16xf32>
    %33 = arith.subf %29, %32 : vector<8x16xf32>
    %34 = math.exp %33 : vector<8x16xf32>
    %cst_17 = arith.constant dense<0.000000e+00> : vector<16xf32>
    %35 = vector.multi_reduction <add>, %34, %cst_17 [0] : vector<8x16xf32> to vector<16xf32>
    %36 = vector.shape_cast %35 : vector<16xf32> to vector<1x16xf32>
    %37 = tpu.reciprocal %36 : vector<1x16xf32> -> vector<1x16xf32>
    %38 = vector.broadcast %37 : vector<1x16xf32> to vector<8x16xf32>
    %39 = arith.mulf %34, %38 : vector<8x16xf32>
    %40 = arith.mulf %39, %19 : vector<8x16xf32>
    %41 = arith.mulf %15, %17 : vector<8x8xf32>
    %cst_18 = arith.constant dense<0.000000e+00> : vector<8x16xf32>
    %42 = tpu.matmul %41, %2, %cst_18 {dimension_numbers = #tpu.dot_dimension_numbers<[1], [0], [0], [1], [0, 0, 1, 1], [], []>} : vector<8x8xf32>, vector<8x16xf32>, vector<8x16xf32> -> vector<8x16xf32>
    %cst_19 = arith.constant dense<0xFF800000> : vector<8xf32>
    %43 = vector.multi_reduction <maximumf>, %42, %cst_19 [1] : vector<8x16xf32> to vector<8xf32>
    %44 = vector.shape_cast %43 : vector<8xf32> to vector<8x1xf32>
    %45 = vector.broadcast %44 : vector<8x1xf32> to vector<8x16xf32>
    %46 = arith.subf %42, %45 : vector<8x16xf32>
    %47 = math.exp %46 : vector<8x16xf32>
    %cst_20 = arith.constant dense<0.000000e+00> : vector<8xf32>
    %48 = vector.multi_reduction <add>, %47, %cst_20 [1] : vector<8x16xf32> to vector<8xf32>
    %49 = vector.shape_cast %48 : vector<8xf32> to vector<8x1xf32>
    %50 = tpu.reciprocal %49 : vector<8x1xf32> -> vector<8x1xf32>
    %51 = vector.broadcast %50 : vector<8x1xf32> to vector<8x16xf32>
    %52 = arith.mulf %47, %51 : vector<8x16xf32>
    %cst_21 = arith.constant dense<0xFF800000> : vector<16xf32>
    %53 = vector.multi_reduction <maximumf>, %52, %cst_21 [0] : vector<8x16xf32> to vector<16xf32>
    %54 = vector.shape_cast %53 : vector<16xf32> to vector<1x16xf32>
    %55 = vector.broadcast %54 : vector<1x16xf32> to vector<8x16xf32>
    %56 = arith.subf %52, %55 : vector<8x16xf32>
    %57 = math.exp %56 : vector<8x16xf32>
    %cst_22 = arith.constant dense<0.000000e+00> : vector<16xf32>
    %58 = vector.multi_reduction <add>, %57, %cst_22 [0] : vector<8x16xf32> to vector<16xf32>
    %59 = vector.shape_cast %58 : vector<16xf32> to vector<1x16xf32>
    %60 = tpu.reciprocal %59 : vector<1x16xf32> -> vector<1x16xf32>
    %61 = vector.broadcast %60 : vector<1x16xf32> to vector<8x16xf32>
    %62 = arith.mulf %57, %61 : vector<8x16xf32>
    %63 = arith.mulf %62, %42 : vector<8x16xf32>
    %64 = tpu.concatenate %40, %63 in 1 : vector<8x16xf32>, vector<8x16xf32> -> vector<8x32xf32>
    %c0_23 = arith.constant 0 : index
    %c0_24 = arith.constant 0 : index
    %65 = vector.load %arg4[%c0_23, %c0_24] : memref<8x32xf32, #tpu.memory_space<vmem>>, vector<8x32xf32>
    tpu.vector_store %arg4[%c0_23, %c0_24], %64 {strides = array<i32>} : memref<8x32xf32, #tpu.memory_space<vmem>>, vector<8x32xf32>,
    return
  }
}

</mosaic_0001>

<llo_original>
// kernel: model_forward.1
$region0: #{model_forward.1}
  #allocation0 [shape = 'u32[]', space=smem, size = 0x4, offset = 0x4, fixed_abs, tag = 'smem constant byte address 0x4 - core index']
  #allocation1 [shape = 'u32[144,128]{1,0:T(1,128)}', space=vmem, size = 0x12000, scoped, tag = 'internal scratch']
  %s0 = inlined_call_operand.vmem [shape: f32[8,32], index: 0, kind: input, shape index: {}]
  %s1 = inlined_call_operand.hbm [shape: f32[8,32], index: 1, kind: input, shape index: {}]
  %s2 = inlined_call_operand.vmem [shape: f32[8,16], index: 2, kind: input, shape index: {}]
  %s3 = inlined_call_operand.hbm [shape: f32[2,32,32], index: 3, kind: input, shape index: {}]
  %s4 = inlined_call_operand.vmem [shape: f32[8,32], index: 4, kind: output, shape index: {}]
  %s5 = sld [smem:[#allocation0]]
  $region34: #{model_forward.1} parent=0
    _
  %s7 = ssub.s32 1, %s5
  %s8 = scalar_select 0, %s7, %s5
  $region1: #{model_forward.1} parent=0
    #allocation2 [shape = 'u8[4096]{0}', space=vmem, size = 0x1000, scoped, tag = 'input window, operand 1, single buffered']
    #allocation3 [shape = 's32[1]{0}', space=sflag, size = 0x4, scoped, tag = 'scoped memory for model_forward.1']
    #allocation4 [shape = 'u8[32768]{0}', space=vmem, size = 0x8000, scoped, tag = 'input window, operand 3, single buffered']
    #allocation5 [shape = 's32[1]{0}', space=sflag, size = 0x4, scoped, tag = 'scoped memory for model_forward.1']
    %9 = vsyncpa [#allocation3], 0
    %10 = vsyncpa [#allocation5], 0
    // Predicated region
    $region2: #{model_forward.1} parent=1 // pred_check
      _
    $region3: #{model_forward.1} parent=1 // pred_check_branch
      %12 = sbr.rel (0) target = $region5
    $region4: #{model_forward.1} parent=1 // pred_region
      _
    $region5: #{model_forward.1} parent=1 // pred_fallthru
      _
    // Predicated region
    $region6: #{model_forward.1} parent=1 // pred_check
      _
    $region7: #{model_forward.1} parent=1 // pred_check_branch
      %14 = sbr.rel (0) target = $region9
    $region8: #{model_forward.1} parent=1 // pred_region
      %s16 = ssub.s32 128, 128
      %17 = vsyncadd [#allocation3], %s16
      %s19 = sshll.u32 [#allocation2], 4
      %s20 = int_to_ptr.vmem [resolvable:$true] %s19
      %22 = dma.hbm_to_vmem [thread:$0]  %s1, 128, %s20, [#allocation3]
    $region9: #{model_forward.1} parent=1 // pred_fallthru
      _
    // Predicated region
    $region10: #{model_forward.1} parent=1 // pred_check
      _
    $region11: #{model_forward.1} parent=1 // pred_check_branch
      %24 = sbr.rel (0) target = $region13
    $region12: #{model_forward.1} parent=1 // pred_region
      _
    $region13: #{model_forward.1} parent=1 // pred_fallthru
      _
    // Predicated region
    $region14: #{model_forward.1} parent=1 // pred_check
      _
    $region15: #{model_forward.1} parent=1 // pred_check_branch
      %26 = sbr.rel (0) target = $region17
    $region16: #{model_forward.1} parent=1 // pred_region
      %s28 = ssub.s32 1024, 1024
      %29 = vsyncadd [#allocation5], %s28
      %s30 = sshll.u32 [#allocation4], 4
      %s31 = int_to_ptr.vmem [resolvable:$true] %s30
      %36 = dma.hbm_to_vmem [thread:$0]  %s3, 1024, %s31, [#allocation5], 128, 128, 8
    $region17: #{model_forward.1} parent=1 // pred_fallthru
      _
    // Predicated region
    $region18: #{model_forward.1} parent=1 // pred_check
      _
    $region19: #{model_forward.1} parent=1 // pred_check_branch
      %38 = sbr.rel (0) target = $region21
    $region20: #{model_forward.1} parent=1 // pred_region
      %39 = dma.done [#allocation3], 128
    $region21: #{model_forward.1} parent=1 // pred_fallthru
      _
    // Predicated region
    $region22: #{model_forward.1} parent=1 // pred_check
      _
    $region23: #{model_forward.1} parent=1 // pred_check_branch
      %41 = sbr.rel (0) target = $region25
    $region24: #{model_forward.1} parent=1 // pred_region
      %42 = dma.done [#allocation5], 1024
    $region25: #{model_forward.1} parent=1 // pred_fallthru
      _
    %v43 = vld [vmem:[%s0] sm:$0xff]
    %v44 = vld [vmem:[#allocation2] sm:$0xff]
    %v45 = vld [vmem:[%s2] sm:$0xff]
    %v46 = vld [vmem:[#allocation4] sm:$0xff]
    %v47 = vld [vmem:[#allocation4 + $0x8] sm:$0xff]
    %v48 = vld [vmem:[#allocation4 + $0x10] sm:$0xff]
    %v49 = vld [vmem:[#allocation4 + $0x18] sm:$0xff]
    %vm50 = vcmask 261120
    %v52 = vsel %vm50, %v43, 0
    %54 = vmatprep.subr.mxu0 0.0
    %55 = vmatpush1.msra.mxu0 %v46
    %56 = vmatprep.subr.mxu0 0.0
    %57 = vmatpush1.msra.mxu0 %v47
    %58 = vmatprep.subr.mxu0 0.0
    %59 = vmatpush1.msra.mxu0 %v48
    %60 = vmatprep.subr.mxu0 0.0
    %61 = vmatpush1.msra.mxu0 %v49
    %62 = vmatprep.subr.mxu0 0.0
    %63 = vmatpush1.msra.mxu0 0.0
    %64 = vmatprep.subr.mxu0 0.0
    %65 = vmatpush1.msra.mxu0 0.0
    %66 = vmatprep.subr.mxu0 0.0
    %67 = vmatpush1.msra.mxu0 0.0
    %68 = vmatprep.subr.mxu0 0.0
    %69 = vmatpush1.msra.mxu0 0.0
    %70 = vmatprep.subr.mxu0 0.0
    %71 = vmatpush1.msra.mxu0 0.0
    %72 = vmatprep.subr.mxu0 0.0
    %73 = vmatpush1.msra.mxu0 0.0
    %74 = vmatprep.subr.mxu0 0.0
    %75 = vmatpush1.msra.mxu0 0.0
    %76 = vmatprep.subr.mxu0 0.0
    %77 = vmatpush1.msra.mxu0 0.0
    %78 = vmatprep.subr.mxu0 0.0
    %79 = vmatpush1.msra.mxu0 0.0
    %80 = vmatprep.subr.mxu0 0.0
    %81 = vmatpush1.msra.mxu0 0.0
    %82 = vmatprep.subr.mxu0 0.0
    %83 = vmatpush1.msra.mxu0 0.0
    %84 = vmatprep.subr.mxu0 0.0
    %85 = vmatpush1.msra.mxu0 0.0
    %86 = vmatprep.subr.mxu0 0.0
    %87 = vmatpush1.msra.mxu0 0.0
    %88 = vmatprep.subr.mxu0 0.0
    %89 = vmatpush1.msra.mxu0 0.0
    %90 = vmatprep.subr.mxu0 0.0
    %91 = vmatpush1.msra.mxu0 0.0
    %92 = vmatprep.subr.mxu0 0.0
    %93 = vmatpush1.msra.mxu0 0.0
    %94 = vmatprep.subr.mxu0 0.0
    %95 = vmatpush1.msra.mxu0 0.0
    %96 = vmatprep.subr.mxu0 0.0
    %97 = vmatpush1.msra.mxu0 0.0
    %98 = vmatprep.subr.mxu0 0.0
    %99 = vmatpush1.msra.mxu0 0.0
    %100 = vmatprep.subr.mxu0 0.0
    %101 = vmatpush1.msra.mxu0 0.0
    %102 = vmatprep.subr.mxu0 0.0
    %103 = vmatpush1.msra.mxu0 0.0
    %104 = vmatprep.subr.mxu0 0.0
    %105 = vmatpush1.msra.mxu0 0.0
    %106 = vmatprep.subr.mxu0 0.0
    %107 = vmatpush1.msra.mxu0 0.0
    %108 = vmatprep.subr.mxu0 0.0
    %109 = vmatpush1.msra.mxu0 0.0
    %110 = vmatprep.subr.mxu0 0.0
    %111 = vmatpush1.msra.mxu0 0.0
    %112 = vmatprep.subr.mxu0 0.0
    %113 = vmatpush1.msra.mxu0 0.0
    %114 = vmatprep.subr.mxu0 0.0
    %115 = vmatpush1.msra.mxu0 0.0
    %116 = vmatprep.subr.mxu0 0.0
    %117 = vmatpush1.msra.mxu0 0.0
    %118 = vmatprep.mubr.f32.mxu0 0.0
    %119 = vmatmul.mubr.f32.gmra.mrb[0].mxu0 %v52
    %v120 = vpop.f32.mrb[0].mxu0
    %v121 = vadd.f32 0.0, %v120
    %v122 = vpop.f32.mrb[0].mxu0
    %123 = vdwg.mxu0
    %v125 = vsel %vm50, %v121, 0
    %v128 = vsel %vm50, %v44, 0
    %130 = vmatprep.subr.mxu0 0.0
    %131 = vmatpush1.xpose.msra.mxu0 %v128
    %132 = vmatprep.subr.mxu0 0.0
    %133 = vmatpush1.xpose.msra.mxu0 0.0
    %134 = vmatprep.subr.mxu0 0.0
    %135 = vmatpush1.xpose.msra.mxu0 0.0
    %136 = vmatprep.subr.mxu0 0.0
    %137 = vmatpush1.xpose.msra.mxu0 0.0
    %138 = vmatprep.subr.mxu0 0.0
    %139 = vmatpush1.xpose.msra.mxu0 0.0
    %140 = vmatprep.subr.mxu0 0.0
    %141 = vmatpush1.xpose.msra.mxu0 0.0
    %142 = vmatprep.subr.mxu0 0.0
    %143 = vmatpush1.xpose.msra.mxu0 0.0
    %144 = vmatprep.subr.mxu0 0.0
    %145 = vmatpush1.xpose.msra.mxu0 0.0
    %146 = vmatprep.subr.mxu0 0.0
    %147 = vmatpush1.xpose.msra.mxu0 0.0
    %148 = vmatprep.subr.mxu0 0.0
    %149 = vmatpush1.xpose.msra.mxu0 0.0
    %150 = vmatprep.subr.mxu0 0.0
    %151 = vmatpush1.xpose.msra.mxu0 0.0
    %152 = vmatprep.subr.mxu0 0.0
    %153 = vmatpush1.xpose.msra.mxu0 0.0
    %154 = vmatprep.subr.mxu0 0.0
    %155 = vmatpush1.xpose.msra.mxu0 0.0
    %156 = vmatprep.subr.mxu0 0.0
    %157 = vmatpush1.xpose.msra.mxu0 0.0
    %158 = vmatprep.subr.mxu0 0.0
    %159 = vmatpush1.xpose.msra.mxu0 0.0
    %160 = vmatprep.subr.mxu0 0.0
    %161 = vmatpush1.xpose.msra.mxu0 0.0
    %162 = vmatprep.subr.mxu0 0.0
    %163 = vmatpush1.xpose.msra.mxu0 0.0
    %164 = vmatprep.subr.mxu0 0.0
    %165 = vmatpush1.xpose.msra.mxu0 0.0
    %166 = vmatprep.subr.mxu0 0.0
    %167 = vmatpush1.xpose.msra.mxu0 0.0
    %168 = vmatprep.subr.mxu0 0.0
    %169 = vmatpush1.xpose.msra.mxu0 0.0
    %170 = vmatprep.subr.mxu0 0.0
    %171 = vmatpush1.xpose.msra.mxu0 0.0
    %172 = vmatprep.subr.mxu0 0.0
    %173 = vmatpush1.xpose.msra.mxu0 0.0
    %174 = vmatprep.subr.mxu0 0.0
    %175 = vmatpush1.xpose.msra.mxu0 0.0
    %176 = vmatprep.subr.mxu0 0.0
    %177 = vmatpush1.xpose.msra.mxu0 0.0
    %178 = vmatprep.subr.mxu0 0.0
    %179 = vmatpush1.xpose.msra.mxu0 0.0
    %180 = vmatprep.subr.mxu0 0.0
    %181 = vmatpush1.xpose.msra.mxu0 0.0
    %182 = vmatprep.subr.mxu0 0.0
    %183 = vmatpush1.xpose.msra.mxu0 0.0
    %184 = vmatprep.subr.mxu0 0.0
    %185 = vmatpush1.xpose.msra.mxu0 0.0
    %186 = vmatprep.subr.mxu0 0.0
    %187 = vmatpush1.xpose.msra.mxu0 0.0
    %188 = vmatprep.subr.mxu0 0.0
    %189 = vmatpush1.xpose.msra.mxu0 0.0
    %190 = vmatprep.subr.mxu0 0.0
    %191 = vmatpush1.xpose.msra.mxu0 0.0
    %192 = vmatprep.subr.mxu0 0.0
    %193 = vmatpush1.xpose.msra.mxu0 0.0
    %194 = vmatprep.mubr.f32.mxu0 0.0
    %195 = vmatmul.mubr.f32.gmra.mrb[0].mxu0 %v125
    %v196 = vpop.f32.mrb[0].mxu0
    %v197 = vadd.f32 0.0, %v196
    %v198 = vpop.f32.mrb[0].mxu0
    %199 = vdwg.mxu0
    %s200 = scalar_lea.vmem [#allocation4], 32
    %v201 = vld [vmem:[%s200] sm:$0xff]
    %v202 = vld [vmem:[%s200 + $0x8] sm:$0xff]
    %v203 = vld [vmem:[%s200 + $0x10] sm:$0xff]
    %v204 = vld [vmem:[%s200 + $0x18] sm:$0xff]
    %205 = vmatprep.subr.mxu0 0.0
    %206 = vmatpush1.msra.mxu0 %v201
    %207 = vmatprep.subr.mxu0 0.0
    %208 = vmatpush1.msra.mxu0 %v202
    %209 = vmatprep.subr.mxu0 0.0
    %210 = vmatpush1.msra.mxu0 %v203
    %211 = vmatprep.subr.mxu0 0.0
    %212 = vmatpush1.msra.mxu0 %v204
    %213 = vmatprep.subr.mxu0 0.0
    %214 = vmatpush1.msra.mxu0 0.0
    %215 = vmatprep.subr.mxu0 0.0
    %216 = vmatpush1.msra.mxu0 0.0
    %217 = vmatprep.subr.mxu0 0.0
    %218 = vmatpush1.msra.mxu0 0.0
    %219 = vmatprep.subr.mxu0 0.0
    %220 = vmatpush1.msra.mxu0 0.0
    %221 = vmatprep.subr.mxu0 0.0
    %222 = vmatpush1.msra.mxu0 0.0
    %223 = vmatprep.subr.mxu0 0.0
    %224 = vmatpush1.msra.mxu0 0.0
    %225 = vmatprep.subr.mxu0 0.0
    %226 = vmatpush1.msra.mxu0 0.0
    %227 = vmatprep.subr.mxu0 0.0
    %228 = vmatpush1.msra.mxu0 0.0
    %229 = vmatprep.subr.mxu0 0.0
    %230 = vmatpush1.msra.mxu0 0.0
    %231 = vmatprep.subr.mxu0 0.0
    %232 = vmatpush1.msra.mxu0 0.0
    %233 = vmatprep.subr.mxu0 0.0
    %234 = vmatpush1.msra.mxu0 0.0
    %235 = vmatprep.subr.mxu0 0.0
    %236 = vmatpush1.msra.mxu0 0.0
    %237 = vmatprep.subr.mxu0 0.0
    %238 = vmatpush1.msra.mxu0 0.0
    %239 = vmatprep.subr.mxu0 0.0
    %240 = vmatpush1.msra.mxu0 0.0
    %241 = vmatprep.subr.mxu0 0.0
    %242 = vmatpush1.msra.mxu0 0.0
    %243 = vmatprep.subr.mxu0 0.0
    %244 = vmatpush1.msra.mxu0 0.0
    %245 = vmatprep.subr.mxu0 0.0
    %246 = vmatpush1.msra.mxu0 0.0
    %247 = vmatprep.subr.mxu0 0.0
    %248 = vmatpush1.msra.mxu0 0.0
    %249 = vmatprep.subr.mxu0 0.0
    %250 = vmatpush1.msra.mxu0 0.0
    %251 = vmatprep.subr.mxu0 0.0
    %252 = vmatpush1.msra.mxu0 0.0
    %253 = vmatprep.subr.mxu0 0.0
    %254 = vmatpush1.msra.mxu0 0.0
    %255 = vmatprep.subr.mxu0 0.0
    %256 = vmatpush1.msra.mxu0 0.0
    %257 = vmatprep.subr.mxu0 0.0
    %258 = vmatpush1.msra.mxu0 0.0
    %259 = vmatprep.subr.mxu0 0.0
    %260 = vmatpush1.msra.mxu0 0.0
    %261 = vmatprep.subr.mxu0 0.0
    %262 = vmatpush1.msra.mxu0 0.0
    %263 = vmatprep.subr.mxu0 0.0
    %264 = vmatpush1.msra.mxu0 0.0
    %265 = vmatprep.subr.mxu0 0.0
    %266 = vmatpush1.msra.mxu0 0.0
    %267 = vmatprep.subr.mxu0 0.0
    %268 = vmatpush1.msra.mxu0 0.0
    %269 = vmatprep.mubr.f32.mxu0 0.0
    %270 = vmatmul.mubr.f32.gmra.mrb[0].mxu0 %v52
    %v271 = vpop.f32.mrb[0].mxu0
    %v272 = vadd.f32 0.0, %v271
    %v273 = vpop.f32.mrb[0].mxu0
    %274 = vdwg.mxu0
    %v276 = vsel %vm50, %v272, 0
    %278 = vmatprep.subr.mxu0 0.0
    %279 = vmatpush1.xpose.msra.mxu0 %v128
    %280 = vmatprep.subr.mxu0 0.0
    %281 = vmatpush1.xpose.msra.mxu0 0.0
    %282 = vmatprep.subr.mxu0 0.0
    %283 = vmatpush1.xpose.msra.mxu0 0.0
    %284 = vmatprep.subr.mxu0 0.0
    %285 = vmatpush1.xpose.msra.mxu0 0.0
    %286 = vmatprep.subr.mxu0 0.0
    %287 = vmatpush1.xpose.msra.mxu0 0.0
    %288 = vmatprep.subr.mxu0 0.0
    %289 = vmatpush1.xpose.msra.mxu0 0.0
    %290 = vmatprep.subr.mxu0 0.0
    %291 = vmatpush1.xpose.msra.mxu0 0.0
    %292 = vmatprep.subr.mxu0 0.0
    %293 = vmatpush1.xpose.msra.mxu0 0.0
    %294 = vmatprep.subr.mxu0 0.0
    %295 = vmatpush1.xpose.msra.mxu0 0.0
    %296 = vmatprep.subr.mxu0 0.0
    %297 = vmatpush1.xpose.msra.mxu0 0.0
    %298 = vmatprep.subr.mxu0 0.0
    %299 = vmatpush1.xpose.msra.mxu0 0.0
    %300 = vmatprep.subr.mxu0 0.0
    %301 = vmatpush1.xpose.msra.mxu0 0.0
    %302 = vmatprep.subr.mxu0 0.0
    %303 = vmatpush1.xpose.msra.mxu0 0.0
    %304 = vmatprep.subr.mxu0 0.0
    %305 = vmatpush1.xpose.msra.mxu0 0.0
    %306 = vmatprep.subr.mxu0 0.0
    %307 = vmatpush1.xpose.msra.mxu0 0.0
    %308 = vmatprep.subr.mxu0 0.0
    %309 = vmatpush1.xpose.msra.mxu0 0.0
    %310 = vmatprep.subr.mxu0 0.0
    %311 = vmatpush1.xpose.msra.mxu0 0.0
    %312 = vmatprep.subr.mxu0 0.0
    %313 = vmatpush1.xpose.msra.mxu0 0.0
    %314 = vmatprep.subr.mxu0 0.0
    %315 = vmatpush1.xpose.msra.mxu0 0.0
    %316 = vmatprep.subr.mxu0 0.0
    %317 = vmatpush1.xpose.msra.mxu0 0.0
    %318 = vmatprep.subr.mxu0 0.0
    %319 = vmatpush1.xpose.msra.mxu0 0.0
    %320 = vmatprep.subr.mxu0 0.0
    %321 = vmatpush1.xpose.msra.mxu0 0.0
    %322 = vmatprep.subr.mxu0 0.0
    %323 = vmatpush1.xpose.msra.mxu0 0.0
    %324 = vmatprep.subr.mxu0 0.0
    %325 = vmatpush1.xpose.msra.mxu0 0.0
    %326 = vmatprep.subr.mxu0 0.0
    %327 = vmatpush1.xpose.msra.mxu0 0.0
    %328 = vmatprep.subr.mxu0 0.0
    %329 = vmatpush1.xpose.msra.mxu0 0.0
    %330 = vmatprep.subr.mxu0 0.0
    %331 = vmatpush1.xpose.msra.mxu0 0.0
    %332 = vmatprep.subr.mxu0 0.0
    %333 = vmatpush1.xpose.msra.mxu0 0.0
    %334 = vmatprep.subr.mxu0 0.0
    %335 = vmatpush1.xpose.msra.mxu0 0.0
    %336 = vmatprep.subr.mxu0 0.0
    %337 = vmatpush1.xpose.msra.mxu0 0.0
    %338 = vmatprep.subr.mxu0 0.0
    %339 = vmatpush1.xpose.msra.mxu0 0.0
    %340 = vmatprep.subr.mxu0 0.0
    %341 = vmatpush1.xpose.msra.mxu0 0.0
    %342 = vmatprep.mubr.f32.mxu0 0.0
    %343 = vmatmul.mubr.f32.gmra.mrb[0].mxu0 %v276
    %v344 = vpop.f32.mrb[0].mxu0
    %v345 = vadd.f32 0.0, %v344
    %v346 = vpop.f32.mrb[0].mxu0
    %347 = vdwg.mxu0
    %v348 = vmax.f32 %v197, %v345
    %v349 = vsub.f32 %v197, %v348
    %v350 = vmul.f32 %v349, 1.442695
    %v351 = vpow.pop %v350
    %v352 = vsub.f32 %v345, %v348
    %v353 = vmul.f32 %v352, 1.442695
    %v354 = vpow.pop %v353
    %v355 = vadd.f32 %v351, %v354
    %v356 = vrcp.pop %v355
    %v357 = vmul.f32 %v351, %v356
    %vm358 = vcmask 64512
    %v360 = vsel %vm358, %v357, 0
    %362 = vmatprep.subr.mxu0 0.0
    %363 = vmatpush1.msra.mxu0 %v45
    %364 = vmatprep.subr.mxu0 0.0
    %365 = vmatpush1.msra.mxu0 0.0
    %366 = vmatprep.subr.mxu0 0.0
    %367 = vmatpush1.msra.mxu0 0.0
    %368 = vmatprep.subr.mxu0 0.0
    %369 = vmatpush1.msra.mxu0 0.0
    %370 = vmatprep.subr.mxu0 0.0
    %371 = vmatpush1.msra.mxu0 0.0
    %372 = vmatprep.subr.mxu0 0.0
    %373 = vmatpush1.msra.mxu0 0.0
    %374 = vmatprep.subr.mxu0 0.0
    %375 = vmatpush1.msra.mxu0 0.0
    %376 = vmatprep.subr.mxu0 0.0
    %377 = vmatpush1.msra.mxu0 0.0
    %378 = vmatprep.subr.mxu0 0.0
    %379 = vmatpush1.msra.mxu0 0.0
    %380 = vmatprep.subr.mxu0 0.0
    %381 = vmatpush1.msra.mxu0 0.0
    %382 = vmatprep.subr.mxu0 0.0
    %383 = vmatpush1.msra.mxu0 0.0
    %384 = vmatprep.subr.mxu0 0.0
    %385 = vmatpush1.msra.mxu0 0.0
    %386 = vmatprep.subr.mxu0 0.0
    %387 = vmatpush1.msra.mxu0 0.0
    %388 = vmatprep.subr.mxu0 0.0
    %389 = vmatpush1.msra.mxu0 0.0
    %390 = vmatprep.subr.mxu0 0.0
    %391 = vmatpush1.msra.mxu0 0.0
    %392 = vmatprep.subr.mxu0 0.0
    %393 = vmatpush1.msra.mxu0 0.0
    %394 = vmatprep.subr.mxu0 0.0
    %395 = vmatpush1.msra.mxu0 0.0
    %396 = vmatprep.subr.mxu0 0.0
    %397 = vmatpush1.msra.mxu0 0.0
    %398 = vmatprep.subr.mxu0 0.0
    %399 = vmatpush1.msra.mxu0 0.0
    %400 = vmatprep.subr.mxu0 0.0
    %401 = vmatpush1.msra.mxu0 0.0
    %402 = vmatprep.subr.mxu0 0.0
    %403 = vmatpush1.msra.mxu0 0.0
    %404 = vmatprep.subr.mxu0 0.0
    %405 = vmatpush1.msra.mxu0 0.0
    %406 = vmatprep.subr.mxu0 0.0
    %407 = vmatpush1.msra.mxu0 0.0
    %408 = vmatprep.subr.mxu0 0.0
    %409 = vmatpush1.msra.mxu0 0.0
    %410 = vmatprep.subr.mxu0 0.0
    %411 = vmatpush1.msra.mxu0 0.0
    %412 = vmatprep.subr.mxu0 0.0
    %413 = vmatpush1.msra.mxu0 0.0
    %414 = vmatprep.subr.mxu0 0.0
    %415 = vmatpush1.msra.mxu0 0.0
    %416 = vmatprep.subr.mxu0 0.0
    %417 = vmatpush1.msra.mxu0 0.0
    %418 = vmatprep.subr.mxu0 0.0
    %419 = vmatpush1.msra.mxu0 0.0
    %420 = vmatprep.subr.mxu0 0.0
    %421 = vmatpush1.msra.mxu0 0.0
    %422 = vmatprep.subr.mxu0 0.0
    %423 = vmatpush1.msra.mxu0 0.0
    %424 = vmatprep.subr.mxu0 0.0
    %425 = vmatpush1.msra.mxu0 0.0
    %426 = vmatprep.mubr.f32.mxu0 0.0
    %427 = vmatmul.mubr.f32.gmra.mrb[0].mxu0 %v360
    %v428 = vpop.f32.mrb[0].mxu0
    %v429 = vadd.f32 0.0, %v428
    %v430 = vpop.f32.mrb[0].mxu0
    %431 = vdwg.mxu0
    %vm432 = vcmask 130048
    %v433 = vsel %vm432, %v429, -inf
    %434 = vmax.xlane.f32.xlu0 %v433
    %v435 = vpop.xlane.xlu0 %434
    %v436 = vsub.f32 %v429, %v435
    %v437 = vmul.f32 %v436, 1.442695
    %v438 = vpow.pop %v437
    %v439 = vsel %vm432, %v438, 0.0
    %440 = vadd.xlane.f32.xlu0 %v439
    %v441 = vpop.xlane.xlu0 %440
    %v442 = vrcp.pop %v441
    %v443 = vmul.f32 %v438, %v442
    %v444 = vsel %vm432, %v443, -inf
    %v445 = vrot.slane %v444, 4
    %v446 = vmax.f32 %v444, %v445
    %v447 = vrot.slane %v446, 2
    %v448 = vmax.f32 %v446, %v447
    %v449 = vrot.slane %v448, 1
    %v450 = vmax.f32 %v448, %v449
    %v451 = vsub.f32 %v443, %v450
    %v452 = vmul.f32 %v451, 1.442695
    %v453 = vpow.pop %v452
    %v454 = vsel %vm432, %v453, 0.0
    %v455 = vrot.slane %v454, 4
    %v456 = vadd.f32 %v454, %v455
    %v457 = vrot.slane %v456, 2
    %v458 = vadd.f32 %v456, %v457
    %v459 = vrot.slane %v458, 1
    %v460 = vadd.f32 %v458, %v459
    %v461 = vrcp.pop %v460
    %v462 = vmul.f32 %v453, %v461
    %v463 = vmul.f32 %v462, %v429
    %v464 = vmul.f32 %v354, %v356
    %v466 = vsel %vm358, %v464, 0
    %468 = vmatprep.subr.mxu0 0.0
    %469 = vmatpush1.msra.mxu0 %v45
    %470 = vmatprep.subr.mxu0 0.0
    %471 = vmatpush1.msra.mxu0 0.0
    %472 = vmatprep.subr.mxu0 0.0
    %473 = vmatpush1.msra.mxu0 0.0
    %474 = vmatprep.subr.mxu0 0.0
    %475 = vmatpush1.msra.mxu0 0.0
    %476 = vmatprep.subr.mxu0 0.0
    %477 = vmatpush1.msra.mxu0 0.0
    %478 = vmatprep.subr.mxu0 0.0
    %479 = vmatpush1.msra.mxu0 0.0
    %480 = vmatprep.subr.mxu0 0.0
    %481 = vmatpush1.msra.mxu0 0.0
    %482 = vmatprep.subr.mxu0 0.0
    %483 = vmatpush1.msra.mxu0 0.0
    %484 = vmatprep.subr.mxu0 0.0
    %485 = vmatpush1.msra.mxu0 0.0
    %486 = vmatprep.subr.mxu0 0.0
    %487 = vmatpush1.msra.mxu0 0.0
    %488 = vmatprep.subr.mxu0 0.0
    %489 = vmatpush1.msra.mxu0 0.0
    %490 = vmatprep.subr.mxu0 0.0
    %491 = vmatpush1.msra.mxu0 0.0
    %492 = vmatprep.subr.mxu0 0.0
    %493 = vmatpush1.msra.mxu0 0.0
    %494 = vmatprep.subr.mxu0 0.0
    %495 = vmatpush1.msra.mxu0 0.0
    %496 = vmatprep.subr.mxu0 0.0
    %497 = vmatpush1.msra.mxu0 0.0
    %498 = vmatprep.subr.mxu0 0.0
    %499 = vmatpush1.msra.mxu0 0.0
    %500 = vmatprep.subr.mxu0 0.0
    %501 = vmatpush1.msra.mxu0 0.0
    %502 = vmatprep.subr.mxu0 0.0
    %503 = vmatpush1.msra.mxu0 0.0
    %504 = vmatprep.subr.mxu0 0.0
    %505 = vmatpush1.msra.mxu0 0.0
    %506 = vmatprep.subr.mxu0 0.0
    %507 = vmatpush1.msra.mxu0 0.0
    %508 = vmatprep.subr.mxu0 0.0
    %509 = vmatpush1.msra.mxu0 0.0
    %510 = vmatprep.subr.mxu0 0.0
    %511 = vmatpush1.msra.mxu0 0.0
    %512 = vmatprep.subr.mxu0 0.0
    %513 = vmatpush1.msra.mxu0 0.0
    %514 = vmatprep.subr.mxu0 0.0
    %515 = vmatpush1.msra.mxu0 0.0
    %516 = vmatprep.subr.mxu0 0.0
    %517 = vmatpush1.msra.mxu0 0.0
    %518 = vmatprep.subr.mxu0 0.0
    %519 = vmatpush1.msra.mxu0 0.0
    %520 = vmatprep.subr.mxu0 0.0
    %521 = vmatpush1.msra.mxu0 0.0
    %522 = vmatprep.subr.mxu0 0.0
    %523 = vmatpush1.msra.mxu0 0.0
    %524 = vmatprep.subr.mxu0 0.0
    %525 = vmatpush1.msra.mxu0 0.0
    %526 = vmatprep.subr.mxu0 0.0
    %527 = vmatpush1.msra.mxu0 0.0
    %528 = vmatprep.subr.mxu0 0.0
    %529 = vmatpush1.msra.mxu0 0.0
    %530 = vmatprep.subr.mxu0 0.0
    %531 = vmatpush1.msra.mxu0 0.0
    %532 = vmatprep.mubr.f32.mxu0 0.0
    %533 = vmatmul.mubr.f32.gmra.mrb[0].mxu0 %v466
    %v534 = vpop.f32.mrb[0].mxu0
    %v535 = vadd.f32 0.0, %v534
    %v536 = vpop.f32.mrb[0].mxu0
    %537 = vdwg.mxu0
    %v538 = vsel %vm432, %v535, -inf
    %539 = vmax.xlane.f32.xlu0 %v538
    %v540 = vpop.xlane.xlu0 %539
    %v541 = vsub.f32 %v535, %v540
    %v542 = vmul.f32 %v541, 1.442695
    %v543 = vpow.pop %v542
    %v544 = vsel %vm432, %v543, 0.0
    %545 = vadd.xlane.f32.xlu0 %v544
    %v546 = vpop.xlane.xlu0 %545
    %v547 = vrcp.pop %v546
    %v548 = vmul.f32 %v543, %v547
    %v549 = vsel %vm432, %v548, -inf
    %v550 = vrot.slane %v549, 4
    %v551 = vmax.f32 %v549, %v550
    %v552 = vrot.slane %v551, 2
    %v553 = vmax.f32 %v551, %v552
    %v554 = vrot.slane %v553, 1
    %v555 = vmax.f32 %v553, %v554
    %v556 = vsub.f32 %v548, %v555
    %v557 = vmul.f32 %v556, 1.442695
    %v558 = vpow.pop %v557
    %v559 = vsel %vm432, %v558, 0.0
    %v560 = vrot.slane %v559, 4
    %v561 = vadd.f32 %v559, %v560
    %v562 = vrot.slane %v561, 2
    %v563 = vadd.f32 %v561, %v562
    %v564 = vrot.slane %v563, 1
    %v565 = vadd.f32 %v563, %v564
    %v566 = vrcp.pop %v565
    %v567 = vmul.f32 %v558, %v566
    %v568 = vmul.f32 %v567, %v535
    %570 = vrot.lane.b32.xlu0 %v568, 16
    %v571 = vpop.permute.xlu0 %570
    %v573 = vsel %vm432, %v463, %v571
    %574 = vst.msk [vmem:[%s4] sm:$0xff] %vm50, %v573
    // Predicated region
    $region26: #{model_forward.1} parent=1 // pred_check
      _
    $region27: #{model_forward.1} parent=1 // pred_check_branch
      %576 = sbr.rel (0) target = $region29
    $region28: #{model_forward.1} parent=1 // pred_region
      _
    $region29: #{model_forward.1} parent=1 // pred_fallthru
      _
    // Predicated region
    $region30: #{model_forward.1} parent=1 // pred_check
      _
    $region31: #{model_forward.1} parent=1 // pred_check_branch
      %578 = sbr.rel (0) target = $region33
    $region32: #{model_forward.1} parent=1 // pred_region
      _
    $region33: #{model_forward.1} parent=1 // pred_fallthru
      _
    %579 = vsyncpa [#allocation3], 1
    %580 = vsyncpa [#allocation5], 1

</llo_original>
